<compile_context>
chip_gen: v5e
topology: v5e:2x2
jax: 0.10.0
libtpu: 0.0.40
codegen_flags: <defaults>
</compile_context>

<pallas_src>
import functools

import jax
import jax.numpy as jnp
from jax import lax
from jax.experimental import pallas as pl
from jax.experimental.pallas import tpu as pltpu


def _fill_padded(x_ref, xpad_ref, *, H, W):
    """Copy the (1, H, W, C) input tile into the interior of the (H+2, W+2, C) scratch.

    Only border rows/columns are (re-)zeroed each step; the interior is fully overwritten,
    so the zero-write traffic is O(H+W) per channel instead of O(H*W).
    """
    C = xpad_ref.shape[-1]
    dt = xpad_ref.dtype
    zrow = jnp.zeros((1, W + 2, C), dt)
    xpad_ref[pl.ds(0, 1)] = zrow
    xpad_ref[pl.ds(H + 1, 1)] = zrow
    zcol = jnp.zeros((H + 2, 1, C), dt)
    xpad_ref[:, pl.ds(0, 1)] = zcol
    xpad_ref[:, pl.ds(W + 1, 1)] = zcol
    # TODO(synk): the column offset of 1 makes this store sublane-misaligned; an
    # 8-aligned interior offset (or a roll+mask pad-free variant) would remove it.
    xpad_ref[pl.ds(1, H), pl.ds(1, W), :] = x_ref[0].astype(dt)


def _pool_sum(xpad_ref, rs_ref, *, H, W, H_out, W_out, stride):
    """3x3 window *sum* (divisor applied by caller) over the zero-padded scratch.

    stride == 1: fully separable, intermediate kept in vregs (no scratch round-trip).
    stride  > 1: both strided selections are single-axis strided ref reads; the small
                 rs scratch keeps them on refs (proven-lowering pattern).
    Returns an (H_out, W_out, C) float32 value (channels on lanes).
    """
    if stride == 1:
        rs = (xpad_ref[:, pl.ds(0, W), :]
              + xpad_ref[:, pl.ds(1, W), :]
              + xpad_ref[:, pl.ds(2, W), :])          # (H+2, W, C), lives in vregs
        return rs[0:H] + rs[1:H + 1] + rs[2:H + 2]    # value slices on untiled H axis
    rs_ref[...] = (xpad_ref[:, pl.ds(0, W_out, stride), :]
                   + xpad_ref[:, pl.ds(1, W_out, stride), :]
                   + xpad_ref[:, pl.ds(2, W_out, stride), :])
    return (rs_ref[pl.ds(0, H_out, stride)]
            + rs_ref[pl.ds(1, H_out, stride)]
            + rs_ref[pl.ds(2, H_out, stride)])


def _pool_kernel(inv_ref, x_ref, o_ref, xpad_ref, *rs, H, W, H_out, W_out, stride):
    rs_ref = rs[0] if rs else None      # rs scratch only allocated when stride > 1
    _fill_padded(x_ref, xpad_ref, H=H, W=W)
    acc = _pool_sum(xpad_ref, rs_ref, H=H, W=W, H_out=H_out, W_out=W_out, stride=stride)
    o_ref[0] = (acc * inv_ref[...]).astype(o_ref.dtype)


def _pool_conv_bn_kernel(inv_ref, x_ref, w_ref, b_ref, o_ref, xpad_ref, *rs,
                         H, W, H_out, W_out, stride, scale_before):
    rs_ref = rs[0] if rs else None
    _fill_padded(x_ref, xpad_ref, H=H, W=W)
    acc = _pool_sum(xpad_ref, rs_ref, H=H, W=W, H_out=H_out, W_out=W_out, stride=stride)
    if scale_before:                      # C_in <= C_out: cheaper to scale before the conv
        acc = acc * inv_ref[...]
    c_in = acc.shape[-1]
    c_out = w_ref.shape[-1]
    # 1x1 conv + folded BN as one MXU matmul with a lane-dense C_out output.
    y = jnp.dot(acc.reshape(H_out * W_out, c_in), w_ref[...],
                preferred_element_type=jnp.float32)
    y = y.reshape(H_out, W_out, c_out)
    if not scale_before:                  # C_out < C_in: divisor commutes with the conv
        y = y * inv_ref[...]
    o_ref[0] = (y + b_ref[...]).astype(o_ref.dtype)


def _pick_c_block(C, H, W, H_out, W_out, in_itemsize, out_itemsize, budget_bytes):
    """Largest channel block keeping double-buffered in/out tiles + scratch in budget.

    C is only split into multiples of 128 (lane-dense blocks that satisfy the (8,128)
    BlockSpec divisibility rule); otherwise the whole channel axis is one block.
    """
    if C % 128 != 0:
        return C

    def per_step_bytes(cb):
        return (2 * H * W * cb * in_itemsize              # double-buffered input tile
                + 2 * H_out * W_out * cb * out_itemsize   # double-buffered output tile
                + (H + 2) * (W + 2) * cb * 4              # padded f32 scratch
                + (H + 2) * W_out * cb * 4)               # rs scratch (stride > 1 only)

    for cb in range(C, 0, -128):
        if C % cb == 0 and per_step_bytes(cb) <= budget_bytes:
            return cb
    return 128


def _inv_count_map(H, W, H_out, W_out, stride):
    # Reciprocal of the number of *valid* (non-pad) elements in each 3x3 window
    # (count_include_pad=False).  Tiny (H_out, W_out) constant, computed once.
    hh = jnp.arange(H_out, dtype=jnp.int32) * stride
    ww = jnp.arange(W_out, dtype=jnp.int32) * stride
    rcnt = jnp.minimum(hh + 1, H - 1) - jnp.maximum(hh - 1, 0) + 1
    ccnt = jnp.minimum(ww + 1, W - 1) - jnp.maximum(ww - 1, 0) + 1
    return 1.0 / (rcnt[:, None] * ccnt[None, :]).astype(jnp.float32)


def avg_layer_forward(x_nchw, params, stride=1):
    """Forward of NASNet avg_layer. x_nchw: (N, C_in, H, W) -> (N, C_out, H_out, W_out)."""
    C_in, C_out = params["C_in"], params["C_out"]
    N, C, H, W = x_nchw.shape
    assert C == C_in
    H_out = (H - 1) // stride + 1
    W_out = (W - 1) // stride + 1
    out_dtype = x_nchw.dtype

    # Divisor map shaped (H_out, W_out, 1) so it lane-broadcasts against channels-on-lanes.
    inv3 = _inv_count_map(H, W, H_out, W_out, stride).reshape(H_out, W_out, 1)

    # Channels-on-lanes layout (wrapper-side plumbing; vanishes in an NHWC-native pipeline).
    x_nhwc = jnp.transpose(x_nchw, (0, 2, 3, 1))

    vmem_limit = 32 * 1024 * 1024     # >= default on v6e/v7x, raises v5e's 16 MiB default
    cparams = pltpu.CompilerParams(dimension_semantics=("parallel", "parallel"),
                                   vmem_limit_bytes=vmem_limit)

    def scratch_list(c_blk):
        s = [pltpu.VMEM((H + 2, W + 2, c_blk), jnp.float32)]
        if stride != 1:
            s.append(pltpu.VMEM((H + 2, W_out, c_blk), jnp.float32))
        return s

    if C_in == C_out:
        c_blk = _pick_c_block(C_in, H, W, H_out, W_out,
                              x_nhwc.dtype.itemsize, jnp.dtype(out_dtype).itemsize,
                              budget_bytes=vmem_limit // 2)
        kern = functools.partial(_pool_kernel, H=H, W=W, H_out=H_out, W_out=W_out,
                                 stride=stride)
        out_nhwc = pl.pallas_call(
            kern,
            out_shape=jax.ShapeDtypeStruct((N, H_out, W_out, C_in), out_dtype),
            grid_spec=pltpu.PrefetchScalarGridSpec(
                num_scalar_prefetch=0,
                grid=(N, C_in // c_blk),
                in_specs=[pl.BlockSpec((H_out, W_out, 1), lambda n, c: (0, 0, 0)),
                          pl.BlockSpec((1, H, W, c_blk), lambda n, c: (n, 0, 0, c))],
                out_specs=pl.BlockSpec((1, H_out, W_out, c_blk),
                                       lambda n, c: (n, 0, 0, c)),
                scratch_shapes=scratch_list(c_blk)),
            compiler_params=cparams,
        )(inv3, x_nhwc)
        return jnp.transpose(out_nhwc, (0, 3, 1, 2))

    # C_in != C_out: pool -> 1x1 conv -> BN(inference), BN folded into the conv (param glue).
    scale = params["bn_gamma"] / jnp.sqrt(params["bn_var"] + 1e-3)            # (C_out,)
    w_fold = (params["conv_w"].reshape(C_out, C_in) * scale[:, None]).T       # (C_in, C_out)
    w_fold = w_fold.astype(jnp.float32)
    b_fold = ((params["conv_b"] - params["bn_mean"]) * scale
              + params["bn_beta"]).reshape(1, C_out).astype(jnp.float32)

    # Second parallel grid axis over C_out tiles (v7x megacore when N is small); only
    # lane-dense tiles (multiples of 128) satisfy the BlockSpec divisibility rule.
    co_blk = 128 if (C_out % 256 == 0) else C_out
    n_co = C_out // co_blk

    kern = functools.partial(_pool_conv_bn_kernel, H=H, W=W, H_out=H_out, W_out=W_out,
                             stride=stride, scale_before=(C_in <= C_out))
    out_nhwc = pl.pallas_call(
        kern,
        out_shape=jax.ShapeDtypeStruct((N, H_out, W_out, C_out), out_dtype),
        grid_spec=pltpu.PrefetchScalarGridSpec(
            num_scalar_prefetch=0,
            grid=(N, n_co),
            in_specs=[pl.BlockSpec((H_out, W_out, 1), lambda n, j: (0, 0, 0)),
                      pl.BlockSpec((1, H, W, C_in), lambda n, j: (n, 0, 0, 0)),
                      pl.BlockSpec((C_in, co_blk), lambda n, j: (0, j)),
                      pl.BlockSpec((1, co_blk), lambda n, j: (0, j))],
            out_specs=pl.BlockSpec((1, H_out, W_out, co_blk), lambda n, j: (n, 0, 0, j)),
            scratch_shapes=scratch_list(C_in)),
        compiler_params=cparams,
    )(inv3, x_nhwc, w_fold, b_fold)
    return jnp.transpose(out_nhwc, (0, 3, 1, 2))


# ---------------------------- pure-JAX reference -----------------------------

def _ref_avg_pool(x_nchw, stride):
    window = (1, 1, 3, 3)
    strides = (1, 1, stride, stride)
    pad = ((0, 0), (0, 0), (1, 1), (1, 1))
    s = lax.reduce_window(x_nchw, 0.0, lax.add, window, strides, pad)
    c = lax.reduce_window(jnp.ones_like(x_nchw), 0.0, lax.add, window, strides, pad)
    return s / c


def _ref_forward(x_nchw, params, stride):
    C_in, C_out = params["C_in"], params["C_out"]
    p = _ref_avg_pool(x_nchw, stride)
    if C_in == C_out:
        return p
    w = params["conv_w"].reshape(C_out, C_in)
    y = jnp.einsum("nchw,oc->nohw", p, w) + params["conv_b"][None, :, None, None]
    scale = (params["bn_gamma"] / jnp.sqrt(params["bn_var"] + 1e-3))[None, :, None, None]
    return (y - params["bn_mean"][None, :, None, None]) * scale \
        + params["bn_beta"][None, :, None, None]


if __name__ == "__main__":
    key = jax.random.PRNGKey(0)
    kx, kw, kb, kg, kbt, km, kv = jax.random.split(key, 7)

    N, C_in, H, W = 2, 8, 16, 16
    x = jax.random.normal(kx, (N, C_in, H, W), jnp.float32)

    configs = [(8, 1),    # C_in == C_out, stride 1 -> pool path (scratch-free stencil)
               (16, 1),   # C_in <  C_out           -> pool + MXU 1x1 conv + BN (scale before)
               (4, 1),    # C_in >  C_out           -> pool + MXU 1x1 conv + BN (scale after)
               (8, 2),    # pool path, stride 2     -> strided ref-read path
               (16, 2)]   # conv path, stride 2
    ok = True
    for C_out, stride in configs:
        params = {
            "C_in": C_in, "C_out": C_out,
            "conv_w": 0.1 * jax.random.normal(kw, (C_out, C_in, 1, 1), jnp.float32),
            "conv_b": 0.05 * jax.random.normal(kb, (C_out,), jnp.float32),
            "bn_gamma": 1.0 + 0.1 * jax.random.normal(kg, (C_out,), jnp.float32),
            "bn_beta": 0.1 * jax.random.normal(kbt, (C_out,), jnp.float32),
            "bn_mean": 0.1 * jax.random.normal(km, (C_out,), jnp.float32),
            "bn_var": jnp.abs(1.0 + 0.1 * jax.random.normal(kv, (C_out,), jnp.float32)),
        }
        out = jax.block_until_ready(avg_layer_forward(x, params, stride=stride))
        ref = _ref_forward(x, params, stride)
        # Tolerance covers MXU f32 pass decomposition on the 1x1-conv path.
        good = (out.shape == ref.shape
                and bool(jnp.allclose(out, ref, atol=1e-3, rtol=1e-3)))
        if not good:
            ok = False
            print(f"MISMATCH C_out={C_out} stride={stride} "
                  f"max_abs_err={float(jnp.max(jnp.abs(out - ref))):.3e}")

    if ok:
        print("KERNEL_OK")
</pallas_src>

<mosaic_0001>
module attributes {stable_mosaic.version = 11 : i64} {
  func.func @_pool_kernel(%arg0: i32, %arg1: i32, %arg2: memref<16x16x1xf32, #tpu.memory_space<vmem>>, %arg3: memref<1x16x16x8xf32, #tpu.memory_space<vmem>>, %arg4: memref<1x16x16x8xf32, #tpu.memory_space<vmem>>, %arg5: memref<18x18x8xf32, #tpu.memory_space<vmem>>) attributes {dimension_semantics = [#tpu.dimension_semantics<parallel>, #tpu.dimension_semantics<parallel>], iteration_bounds = array<i64: 2, 1>, scalar_prefetch = 0 : i64, scratch_operands = 1 : i64, tpu.core_type = #tpu.core_type<tc>, window_params = [{pipeline_mode = #tpu.pipeline_mode<synchronous>, transform_indices = @transform_0, window_bounds = array<i64: 16, 16, 1>}, {transform_indices = @transform_1, window_bounds = array<i64: 1, 16, 16, 8>}, {transform_indices = @transform_2, window_bounds = array<i64: 1, 16, 16, 8>}]} {
    %cst = arith.constant 0.000000e+00 : f32
    %0 = vector.broadcast %cst : f32 to vector<1x18x8xf32>
    %c0 = arith.constant 0 : index
    %c0_0 = arith.constant 0 : index
    %c0_1 = arith.constant 0 : index
    %1 = vector.load %arg5[%c0, %c0_0, %c0_1] : memref<18x18x8xf32, #tpu.memory_space<vmem>>, vector<1x18x8xf32>
    tpu.vector_store %arg5[%c0, %c0_0, %c0_1], %0 {strides = array<i32>} : memref<18x18x8xf32, #tpu.memory_space<vmem>>, vector<1x18x8xf32>,
    %c17 = arith.constant 17 : index
    %c0_2 = arith.constant 0 : index
    %c0_3 = arith.constant 0 : index
    %2 = vector.load %arg5[%c17, %c0_2, %c0_3] : memref<18x18x8xf32, #tpu.memory_space<vmem>>, vector<1x18x8xf32>
    tpu.vector_store %arg5[%c17, %c0_2, %c0_3], %0 {strides = array<i32>} : memref<18x18x8xf32, #tpu.memory_space<vmem>>, vector<1x18x8xf32>,
    %cst_4 = arith.constant 0.000000e+00 : f32
    %3 = vector.broadcast %cst_4 : f32 to vector<18x1x8xf32>
    %c0_5 = arith.constant 0 : index
    %c0_6 = arith.constant 0 : index
    %c0_7 = arith.constant 0 : index
    %4 = vector.load %arg5[%c0_5, %c0_6, %c0_7] : memref<18x18x8xf32, #tpu.memory_space<vmem>>, vector<18x1x8xf32>
    tpu.vector_store %arg5[%c0_5, %c0_6, %c0_7], %3 {strides = array<i32>} : memref<18x18x8xf32, #tpu.memory_space<vmem>>, vector<18x1x8xf32>,
    %c0_8 = arith.constant 0 : index
    %c17_9 = arith.constant 17 : index
    %c0_10 = arith.constant 0 : index
    %5 = vector.load %arg5[%c0_8, %c17_9, %c0_10] : memref<18x18x8xf32, #tpu.memory_space<vmem>>, vector<18x1x8xf32>
    tpu.vector_store %arg5[%c0_8, %c17_9, %c0_10], %3 {strides = array<i32>} : memref<18x18x8xf32, #tpu.memory_space<vmem>>, vector<18x1x8xf32>,
    %c0_11 = arith.constant 0 : index
    %c0_12 = arith.constant 0 : index
    %c0_13 = arith.constant 0 : index
    %c0_14 = arith.constant 0 : index
    %6 = vector.load %arg3[%c0_11, %c0_12, %c0_13, %c0_14] : memref<1x16x16x8xf32, #tpu.memory_space<vmem>>, vector<1x16x16x8xf32>
    %7 = vector.shape_cast %6 : vector<1x16x16x8xf32> to vector<16x16x8xf32>
    %c1 = arith.constant 1 : index
    %c1_15 = arith.constant 1 : index
    %c0_16 = arith.constant 0 : index
    %8 = vector.load %arg5[%c1, %c1_15, %c0_16] : memref<18x18x8xf32, #tpu.memory_space<vmem>>, vector<16x16x8xf32>
    tpu.vector_store %arg5[%c1, %c1_15, %c0_16], %7 {strides = array<i32>} : memref<18x18x8xf32, #tpu.memory_space<vmem>>, vector<16x16x8xf32>,
    %c0_17 = arith.constant 0 : index
    %c0_18 = arith.constant 0 : index
    %c0_19 = arith.constant 0 : index
    %9 = vector.load %arg5[%c0_17, %c0_18, %c0_19] : memref<18x18x8xf32, #tpu.memory_space<vmem>>, vector<18x16x8xf32>
    %c0_20 = arith.constant 0 : index
    %c1_21 = arith.constant 1 : index
    %c0_22 = arith.constant 0 : index
    %10 = vector.load %arg5[%c0_20, %c1_21, %c0_22] : memref<18x18x8xf32, #tpu.memory_space<vmem>>, vector<18x16x8xf32>
    %11 = arith.addf %9, %10 : vector<18x16x8xf32>
    %c0_23 = arith.constant 0 : index
    %c2 = arith.constant 2 : index
    %c0_24 = arith.constant 0 : index
    %12 = vector.load %arg5[%c0_23, %c2, %c0_24] : memref<18x18x8xf32, #tpu.memory_space<vmem>>, vector<18x16x8xf32>
    %13 = arith.addf %11, %12 : vector<18x16x8xf32>
    %14 = vector.extract_strided_slice %13 {offsets = [0, 0, 0], sizes = [16, 16, 8], strides = [1, 1, 1]} : vector<18x16x8xf32> to vector<16x16x8xf32>
    %15 = vector.extract_strided_slice %13 {offsets = [1, 0, 0], sizes = [16, 16, 8], strides = [1, 1, 1]} : vector<18x16x8xf32> to vector<16x16x8xf32>
    %16 = arith.addf %14, %15 : vector<16x16x8xf32>
    %17 = vector.extract_strided_slice %13 {offsets = [2, 0, 0], sizes = [16, 16, 8], strides = [1, 1, 1]} : vector<18x16x8xf32> to vector<16x16x8xf32>
    %18 = arith.addf %16, %17 : vector<16x16x8xf32>
    %c0_25 = arith.constant 0 : index
    %c0_26 = arith.constant 0 : index
    %c0_27 = arith.constant 0 : index
    %19 = vector.load %arg2[%c0_25, %c0_26, %c0_27] : memref<16x16x1xf32, #tpu.memory_space<vmem>>, vector<16x16x1xf32>
    %20 = vector.broadcast %19 : vector<16x16x1xf32> to vector<16x16x8xf32>
    %21 = arith.mulf %18, %20 : vector<16x16x8xf32>
    %c0_28 = arith.constant 0 : index
    %c0_29 = arith.constant 0 : index
    %c0_30 = arith.constant 0 : index
    %c0_31 = arith.constant 0 : index
    %22 = vector.load %arg4[%c0_28, %c0_29, %c0_30, %c0_31] : memref<1x16x16x8xf32, #tpu.memory_space<vmem>>, vector<1x16x16x8xf32>
    %23 = vector.shape_cast %22 : vector<1x16x16x8xf32> to vector<16x16x8xf32>
    %24 = vector.shape_cast %21 : vector<16x16x8xf32> to vector<1x16x16x8xf32>
    tpu.vector_store %arg4[%c0_28, %c0_29, %c0_30, %c0_31], %24 {strides = array<i32>} : memref<1x16x16x8xf32, #tpu.memory_space<vmem>>, vector<1x16x16x8xf32>,
    return
  }
  func.func @transform_0(%arg0: i32, %arg1: i32) -> (i32, i32, i32) {
    %c0_i32 = arith.constant 0 : i32
    %c0_i32_0 = arith.constant 0 : i32
    %c0_i32_1 = arith.constant 0 : i32
    %c0_i32_2 = arith.constant 0 : i32
    return %c0_i32, %c0_i32_0, %c0_i32_1 : i32, i32, i32
  }
  func.func @transform_1(%arg0: i32, %arg1: i32) -> (i32, i32, i32, i32) {
    %c0_i32 = arith.constant 0 : i32
    %c0_i32_0 = arith.constant 0 : i32
    %c0_i32_1 = arith.constant 0 : i32
    return %arg0, %c0_i32, %c0_i32_0, %arg1 : i32, i32, i32, i32
  }
  func.func @transform_2(%arg0: i32, %arg1: i32) -> (i32, i32, i32, i32) {
    %c0_i32 = arith.constant 0 : i32
    %c0_i32_0 = arith.constant 0 : i32
    %c0_i32_1 = arith.constant 0 : i32
    return %arg0, %c0_i32, %c0_i32_0, %arg1 : i32, i32, i32, i32
  }
}

</mosaic_0001>

<llo_original>
// kernel: tpu_custom_call.1
$region0: #{tpu_custom_call.1}
  #allocation0 [shape = 'u32[]', space=smem, size = 0x4, offset = 0x4, fixed_abs, tag = 'smem constant byte address 0x4 - core index']
  #allocation1 [shape = 'u32[72,128]{1,0:T(1,128)}', space=vmem, size = 0x9000, scoped, tag = 'internal scratch']
  #allocation2 [shape = 'f32[18,18,8]{2,1,0:T(8,128)}', space=vmem, size = 0x36000, scoped, tag = 'scratch operand']
  %s0 = inlined_call_operand.vmem [shape: f32[16,16,1], index: 0, kind: input, shape index: {}]
  %s1 = inlined_call_operand.vmem [shape: f32[2,16,16,8], index: 1, kind: input, shape index: {}]
  %s2 = inlined_call_operand.vmem [shape: f32[2,16,16,8], index: 2, kind: output, shape index: {}]
  %s3 = sld [smem:[#allocation0]]
  $region41: #{tpu_custom_call.1} parent=0
    _
  %s5 = ssub.s32 1, %s3
  %s6 = scalar_select 0, %s5, %s3
  loop: start=0, step=1, limit=4
  $region2: #{tpu_custom_call.1} parent=0 // loop_pre_header
    _
  $region3: #{tpu_custom_call.1} parent=0 // loop_header
    %s8 = sphi 0, %s12
    %p9 = scmp.ge.s32.totalorder %s8, 4
    %s15 = sphi 0, %s27
    %s16 = sphi 0, %s23
    %s17 = sphi 0, %s15
    %s18 = sphi 0, %s16
    %s19 = sphi 0, %s17
    %s20 = sphi 0, %s18
    %s28 = sphi 0, %s28
    %s30 = sphi 0, %s28
    %s31 = sphi 0, %s30
    %s45 = sphi 0, %s31
    %s53 = sphi 0, %s55
    %s56 = sphi 0, %s53
    %s57 = sphi 0, %s56
    %s73 = sphi 0, %s57
    %s81 = sphi 0, %s83
    %s84 = sphi 0, %s81
    %s85 = sphi 0, %s84
    %s101 = sphi 0, %s85
  $region4: #{tpu_custom_call.1} parent=0 // loop_header_branch
    %11 = sbr.rel (%p9) target = $region8
  $region5: #{tpu_custom_call.1} parent=0 // loop_body
    %s13 = ssub.s32 %s8, 1
    %s14 = ssub.s32 %s8, 2
    %s21 = sadd.s32 1, %s16
    %p22 = scmp.ge.s32.totalorder %s21, 1
    %s23 = scalar_select %p22, 0, %s21
    %s24 = sadd.s32 1, %s15
    %s25 = scalar_select %p22, %s24, %s15
    %p26 = scmp.ge.s32.totalorder %s25, 2
    %s27 = scalar_select %p26, 0, %s25
    %s29 = sadd.s32 %s28, 1
    %p32 = scmp.eq.s32.totalorder %s8, 1
    %p33 = scmp.ne.s32.totalorder %s28, %s30
    %p34 = scmp.eq.s32.totalorder %s8, 0
    %p35 = por %p33, %p34
    %p36 = scmp.ne.s32.totalorder %s28, %s30
    %p37 = scmp.eq.s32.totalorder %s13, 1
    %p38 = por %p36, %p37
    %p39 = scmp.ne.s32.totalorder %s30, %s31
    %p40 = scmp.eq.s32.totalorder %s13, 0
    %p41 = por %p39, %p40
    %p42 = scmp.ne.s32.totalorder %s30, %s31
    %p43 = scmp.eq.s32.totalorder %s14, 1
    %p44 = por %p42, %p43
    %p46 = scmp.ne.s32.totalorder %s31, %s45
    %p47 = scmp.eq.s32.totalorder %s14, 0
    %p48 = por %p46, %p47
    %s49 = ssub.s32 %s15, %s27
    %s50 = ssub.s32 %s16, %s23
    %s51 = sor.u32 %s49, %s50
    %p52 = scmp.eq.s32.totalorder %s51, 0
    %s54 = sadd.s32 %s53, 1
    %s55 = scalar_select %p52, %s53, %s54
    %p58 = pneg %p52
    %p59 = scmp.eq.s32.totalorder %s8, 1
    %p60 = por %p58, %p59
    %p61 = scmp.ne.s32.totalorder %s53, %s56
    %p62 = scmp.eq.s32.totalorder %s8, 0
    %p63 = por %p61, %p62
    %p64 = scmp.ne.s32.totalorder %s53, %s56
    %p65 = scmp.eq.s32.totalorder %s13, 1
    %p66 = por %p64, %p65
    %p67 = scmp.ne.s32.totalorder %s56, %s57
    %p68 = scmp.eq.s32.totalorder %s13, 0
    %p69 = por %p67, %p68
    %p70 = scmp.ne.s32.totalorder %s56, %s57
    %p71 = scmp.eq.s32.totalorder %s14, 1
    %p72 = por %p70, %p71
    %p74 = scmp.ne.s32.totalorder %s57, %s73
    %p75 = scmp.eq.s32.totalorder %s14, 0
    %p76 = por %p74, %p75
    %s77 = ssub.s32 %s15, %s27
    %s78 = ssub.s32 %s16, %s23
    %s79 = sor.u32 %s77, %s78
    %p80 = scmp.eq.s32.totalorder %s79, 0
    %s82 = sadd.s32 %s81, 1
    %s83 = scalar_select %p80, %s81, %s82
    %p86 = pneg %p80
    %p87 = scmp.eq.s32.totalorder %s8, 1
    %p88 = por %p86, %p87
    %p89 = scmp.ne.s32.totalorder %s81, %s84
    %p90 = scmp.eq.s32.totalorder %s8, 0
    %p91 = por %p89, %p90
    %p92 = scmp.ne.s32.totalorder %s81, %s84
    %p93 = scmp.eq.s32.totalorder %s13, 1
    %p94 = por %p92, %p93
    %p95 = scmp.ne.s32.totalorder %s84, %s85
    %p96 = scmp.eq.s32.totalorder %s13, 0
    %p97 = por %p95, %p96
    %p98 = scmp.ne.s32.totalorder %s84, %s85
    %p99 = scmp.eq.s32.totalorder %s14, 1
    %p100 = por %p98, %p99
    %p102 = scmp.ne.s32.totalorder %s85, %s101
    %p103 = scmp.eq.s32.totalorder %s14, 0
    %p104 = por %p102, %p103
    %p105 = scmp.le.s32.totalorder 1, %s8
    %p106 = scmp.lt.s32.totalorder %s8, 3
    %p107 = pnand %p105, %p106
    %p108 = pneg %p107
    // Predicated region
    $region9: #{tpu_custom_call.1} parent=5 // pred_check
      _
    $region10: #{tpu_custom_call.1} parent=5 // pred_check_branch
      %110 = sbr.rel (%p107) target = $region12
    $region11: #{tpu_custom_call.1} parent=5 // pred_region
      %s111 = ssub.s32 %s8, 1
      // Predicated region
      $region13: #{tpu_custom_call.1} parent=11 // pred_check
        %p112 = pneg %p41
      $region14: #{tpu_custom_call.1} parent=11 // pred_check_branch
        %114 = sbr.rel (%p112) target = $region16
      $region15: #{tpu_custom_call.1} parent=11 // pred_region
        _
      $region16: #{tpu_custom_call.1} parent=11 // pred_fallthru
        _
    $region12: #{tpu_custom_call.1} parent=5 // pred_fallthru
      _
    %p115 = scmp.lt.s32.totalorder %s8, 2
    // Predicated region
    $region17: #{tpu_custom_call.1} parent=5 // pred_check
      %p116 = pneg %p115
    $region18: #{tpu_custom_call.1} parent=5 // pred_check_branch
      %118 = sbr.rel (%p116) target = $region20
    $region19: #{tpu_custom_call.1} parent=5 // pred_region
      // Predicated region
      $region21: #{tpu_custom_call.1} parent=19 // pred_check
        %p119 = pneg %p63
      $region22: #{tpu_custom_call.1} parent=19 // pred_check_branch
        %121 = sbr.rel (%p119) target = $region24
      $region23: #{tpu_custom_call.1} parent=19 // pred_region
        %p122 = scmp.lt.s32.totalorder %s15, 1
        %s123 = scalar_select %p122, %s15, 1
        %p124 = scmp.lt.s32.totalorder %s16, 0
        %s125 = scalar_select %p124, %s16, 0
        %s126 = smul.addr %s123, 32
        %s127 = sadd.s32 %s125, %s126
        %s128 = smul.addr %s127, 8
        %s129 = scalar_lea.vmem %s1, %s128
      $region24: #{tpu_custom_call.1} parent=19 // pred_fallthru
        _
    $region20: #{tpu_custom_call.1} parent=5 // pred_fallthru
      _
    %p130 = scmp.le.s32.totalorder 1, %s8
    %p131 = scmp.lt.s32.totalorder %s8, 3
    %p132 = pnand %p130, %p131
    %p133 = pneg %p132
    // Predicated region
    $region25: #{tpu_custom_call.1} parent=5 // pred_check
      _
    $region26: #{tpu_custom_call.1} parent=5 // pred_check_branch
      %135 = sbr.rel (%p132) target = $region28
    $region27: #{tpu_custom_call.1} parent=5 // pred_region
      %s136 = ssub.s32 %s8, 1
      %p137 = pneg %p41
      %p138 = pneg %p38
      %p139 = scmp.lt.s32.totalorder %s17, 1
      %s140 = scalar_select %p139, %s17, 1
      %p141 = scmp.lt.s32.totalorder %s18, 0
      %s142 = scalar_select %p141, %s18, 0
      %s143 = smul.addr %s140, 32
      %s144 = sadd.s32 %s142, %s143
      %s145 = smul.addr %s144, 8
      %s146 = scalar_lea.vmem %s1, %s145
      %p147 = pneg %p69
      %p148 = pneg %p66
      %p149 = pneg %p97
      %p150 = pneg %p94
      %p151 = scmp.lt.s32.totalorder %s17, 1
      %s152 = scalar_select %p151, %s17, 1
      %p153 = scmp.lt.s32.totalorder %s18, 0
      %s154 = scalar_select %p153, %s18, 0
      %s155 = smul.addr %s152, 32
      %s156 = sadd.s32 %s154, %s155
      %s157 = smul.addr %s156, 8
      %s158 = scalar_lea.vmem %s2, %s157
      %p159 = scmp.lt.s32.totalorder %s17, 1
      %s160 = scalar_select %p159, %s17, 1
      %p161 = scmp.lt.s32.totalorder %s18, 0
      %s162 = scalar_select %p161, %s18, 0
      %s163 = smul.addr %s160, 32
      %s164 = sadd.s32 %s162, %s163
      %s165 = smul.addr %s164, 8
      %s166 = scalar_lea.vmem %s1, %s165
      %p167 = scmp.lt.s32.totalorder %s17, 1
      %s168 = scalar_select %p167, %s17, 1
      %p169 = scmp.lt.s32.totalorder %s18, 0
      %s170 = scalar_select %p169, %s18, 0
      %s171 = smul.addr %s168, 32
      %s172 = sadd.s32 %s170, %s171
      %s173 = smul.addr %s172, 8
      %s174 = scalar_lea.vmem %s2, %s173
      %vm175 = vcmask 64512
      %176 = vst.msk [vmem:[#allocation2] sm:$0xff] %vm175, 0.0
      %177 = vst.msk [vmem:[#allocation2 + $0x8] sm:$0xff] %vm175, 0.0
      %vm178 = vcmask 58368
      %179 = vst.msk [vmem:[#allocation2 + $0x10] sm:$0x3] %vm178, 0.0
      %s180 = scalar_lea.vmem [#allocation2], 408
      %181 = vst.msk [vmem:[%s180] sm:$0xff] %vm175, 0.0
      %182 = vst.msk [vmem:[%s180 + $0x8] sm:$0xff] %vm175, 0.0
      %183 = vst.msk [vmem:[%s180 + $0x10] sm:$0x3] %vm178, 0.0
      %vm184 = vcmask 57344
      %185 = vst.msk [vmem:[#allocation2] sm:$0x1] %vm184, 0.0
      %186 = vst.msk [vmem:[#allocation2 + $0x18] sm:$0x1] %vm184, 0.0
      %187 = vst.msk [vmem:[#allocation2 + $0x30] sm:$0x1] %vm184, 0.0
      %188 = vst.msk [vmem:[#allocation2 + $0x48] sm:$0x1] %vm184, 0.0
      %189 = vst.msk [vmem:[#allocation2 + $0x60] sm:$0x1] %vm184, 0.0
      %190 = vst.msk [vmem:[#allocation2 + $0x78] sm:$0x1] %vm184, 0.0
      %191 = vst.msk [vmem:[#allocation2 + $0x90] sm:$0x1] %vm184, 0.0
      %192 = vst.msk [vmem:[#allocation2 + $0xa8] sm:$0x1] %vm184, 0.0
      %193 = vst.msk [vmem:[#allocation2 + $0xc0] sm:$0x1] %vm184, 0.0
      %194 = vst.msk [vmem:[#allocation2 + $0xd8] sm:$0x1] %vm184, 0.0
      %195 = vst.msk [vmem:[#allocation2 + $0xf0] sm:$0x1] %vm184, 0.0
      %196 = vst.msk [vmem:[#allocation2 + $0x108] sm:$0x1] %vm184, 0.0
      %197 = vst.msk [vmem:[#allocation2 + $0x120] sm:$0x1] %vm184, 0.0
      %198 = vst.msk [vmem:[#allocation2 + $0x138] sm:$0x1] %vm184, 0.0
      %199 = vst.msk [vmem:[#allocation2 + $0x150] sm:$0x1] %vm184, 0.0
      %200 = vst.msk [vmem:[#allocation2 + $0x168] sm:$0x1] %vm184, 0.0
      %201 = vst.msk [vmem:[#allocation2 + $0x180] sm:$0x1] %vm184, 0.0
      %202 = vst.msk [vmem:[#allocation2 + $0x198] sm:$0x1] %vm184, 0.0
      %203 = vst.msk [vmem:[#allocation2 + $0x11] sm:$0x1] %vm184, 0.0
      %204 = vst.msk [vmem:[#allocation2 + $0x29] sm:$0x1] %vm184, 0.0
      %205 = vst.msk [vmem:[#allocation2 + $0x41] sm:$0x1] %vm184, 0.0
      %206 = vst.msk [vmem:[#allocation2 + $0x59] sm:$0x1] %vm184, 0.0
      %207 = vst.msk [vmem:[#allocation2 + $0x71] sm:$0x1] %vm184, 0.0
      %208 = vst.msk [vmem:[#allocation2 + $0x89] sm:$0x1] %vm184, 0.0
      %209 = vst.msk [vmem:[#allocation2 + $0xa1] sm:$0x1] %vm184, 0.0
      %210 = vst.msk [vmem:[#allocation2 + $0xb9] sm:$0x1] %vm184, 0.0
      %211 = vst.msk [vmem:[#allocation2 + $0xd1] sm:$0x1] %vm184, 0.0
      %212 = vst.msk [vmem:[#allocation2 + $0xe9] sm:$0x1] %vm184, 0.0
      %213 = vst.msk [vmem:[#allocation2 + $0x101] sm:$0x1] %vm184, 0.0
      %214 = vst.msk [vmem:[#allocation2 + $0x119] sm:$0x1] %vm184, 0.0
      %215 = vst.msk [vmem:[#allocation2 + $0x131] sm:$0x1] %vm184, 0.0
      %216 = vst.msk [vmem:[#allocation2 + $0x149] sm:$0x1] %vm184, 0.0
      %217 = vst.msk [vmem:[#allocation2 + $0x161] sm:$0x1] %vm184, 0.0
      %218 = vst.msk [vmem:[#allocation2 + $0x179] sm:$0x1] %vm184, 0.0
      %219 = vst.msk [vmem:[#allocation2 + $0x191] sm:$0x1] %vm184, 0.0
      %220 = vst.msk [vmem:[#allocation2 + $0x1a9] sm:$0x1] %vm184, 0.0
      %v221 = vld [vmem:[%s166] sm:$0xff]
      %v222 = vld [vmem:[%s166 + $0x8] sm:$0xff]
      %v223 = vld [vmem:[%s166 + $0x10] sm:$0xff]
      %v224 = vld [vmem:[%s166 + $0x18] sm:$0xff]
      %v225 = vld [vmem:[%s166 + $0x20] sm:$0xff]
      %v226 = vld [vmem:[%s166 + $0x28] sm:$0xff]
      %v227 = vld [vmem:[%s166 + $0x30] sm:$0xff]
      %v228 = vld [vmem:[%s166 + $0x38] sm:$0xff]
      %v229 = vld [vmem:[%s166 + $0x40] sm:$0xff]
      %v230 = vld [vmem:[%s166 + $0x48] sm:$0xff]
      %v231 = vld [vmem:[%s166 + $0x50] sm:$0xff]
      %v232 = vld [vmem:[%s166 + $0x58] sm:$0xff]
      %v233 = vld [vmem:[%s166 + $0x60] sm:$0xff]
      %v234 = vld [vmem:[%s166 + $0x68] sm:$0xff]
      %v235 = vld [vmem:[%s166 + $0x70] sm:$0xff]
      %v236 = vld [vmem:[%s166 + $0x78] sm:$0xff]
      %v237 = vld [vmem:[%s166 + $0x80] sm:$0xff]
      %v238 = vld [vmem:[%s166 + $0x88] sm:$0xff]
      %v239 = vld [vmem:[%s166 + $0x90] sm:$0xff]
      %v240 = vld [vmem:[%s166 + $0x98] sm:$0xff]
      %v241 = vld [vmem:[%s166 + $0xa0] sm:$0xff]
      %v242 = vld [vmem:[%s166 + $0xa8] sm:$0xff]
      %v243 = vld [vmem:[%s166 + $0xb0] sm:$0xff]
      %v244 = vld [vmem:[%s166 + $0xb8] sm:$0xff]
      %v245 = vld [vmem:[%s166 + $0xc0] sm:$0xff]
      %v246 = vld [vmem:[%s166 + $0xc8] sm:$0xff]
      %v247 = vld [vmem:[%s166 + $0xd0] sm:$0xff]
      %v248 = vld [vmem:[%s166 + $0xd8] sm:$0xff]
      %v249 = vld [vmem:[%s166 + $0xe0] sm:$0xff]
      %v250 = vld [vmem:[%s166 + $0xe8] sm:$0xff]
      %v251 = vld [vmem:[%s166 + $0xf0] sm:$0xff]
      %v252 = vld [vmem:[%s166 + $0xf8] sm:$0xff]
      %s253 = scalar_lea.vmem [#allocation2], 24
      %254 = vst.msk [vmem:[%s253 + $0x1] sm:$0xff] %vm175, %v221
      %255 = vst.msk [vmem:[%s253 + $0x9] sm:$0xff] %vm175, %v222
      %256 = vst.msk [vmem:[%s253 + $0x19] sm:$0xff] %vm175, %v223
      %257 = vst.msk [vmem:[%s253 + $0x21] sm:$0xff] %vm175, %v224
      %258 = vst.msk [vmem:[%s253 + $0x31] sm:$0xff] %vm175, %v225
      %259 = vst.msk [vmem:[%s253 + $0x39] sm:$0xff] %vm175, %v226
      %260 = vst.msk [vmem:[%s253 + $0x49] sm:$0xff] %vm175, %v227
      %261 = vst.msk [vmem:[%s253 + $0x51] sm:$0xff] %vm175, %v228
      %262 = vst.msk [vmem:[%s253 + $0x61] sm:$0xff] %vm175, %v229
      %263 = vst.msk [vmem:[%s253 + $0x69] sm:$0xff] %vm175, %v230
      %264 = vst.msk [vmem:[%s253 + $0x79] sm:$0xff] %vm175, %v231
      %265 = vst.msk [vmem:[%s253 + $0x81] sm:$0xff] %vm175, %v232
      %266 = vst.msk [vmem:[%s253 + $0x91] sm:$0xff] %vm175, %v233
      %267 = vst.msk [vmem:[%s253 + $0x99] sm:$0xff] %vm175, %v234
      %268 = vst.msk [vmem:[%s253 + $0xa9] sm:$0xff] %vm175, %v235
      %269 = vst.msk [vmem:[%s253 + $0xb1] sm:$0xff] %vm175, %v236
      %270 = vst.msk [vmem:[%s253 + $0xc1] sm:$0xff] %vm175, %v237
      %271 = vst.msk [vmem:[%s253 + $0xc9] sm:$0xff] %vm175, %v238
      %272 = vst.msk [vmem:[%s253 + $0xd9] sm:$0xff] %vm175, %v239
      %273 = vst.msk [vmem:[%s253 + $0xe1] sm:$0xff] %vm175, %v240
      %274 = vst.msk [vmem:[%s253 + $0xf1] sm:$0xff] %vm175, %v241
      %275 = vst.msk [vmem:[%s253 + $0xf9] sm:$0xff] %vm175, %v242
      %276 = vst.msk [vmem:[%s253 + $0x109] sm:$0xff] %vm175, %v243
      %277 = vst.msk [vmem:[%s253 + $0x111] sm:$0xff] %vm175, %v244
      %278 = vst.msk [vmem:[%s253 + $0x121] sm:$0xff] %vm175, %v245
      %279 = vst.msk [vmem:[%s253 + $0x129] sm:$0xff] %vm175, %v246
      %280 = vst.msk [vmem:[%s253 + $0x139] sm:$0xff] %vm175, %v247
      %281 = vst.msk [vmem:[%s253 + $0x141] sm:$0xff] %vm175, %v248
      %282 = vst.msk [vmem:[%s253 + $0x151] sm:$0xff] %vm175, %v249
      %283 = vst.msk [vmem:[%s253 + $0x159] sm:$0xff] %vm175, %v250
      %284 = vst.msk [vmem:[%s253 + $0x169] sm:$0xff] %vm175, %v251
      %285 = vst.msk [vmem:[%s253 + $0x171] sm:$0xff] %vm175, %v252
      %v286 = vld [vmem:[#allocation2] sm:$0xff]
      %v287 = vld [vmem:[#allocation2 + $0x8] sm:$0xff]
      %v288 = vld [vmem:[#allocation2 + $0x18] sm:$0xff]
      %v289 = vld [vmem:[#allocation2 + $0x20] sm:$0xff]
      %v290 = vld [vmem:[#allocation2 + $0x30] sm:$0xff]
      %v291 = vld [vmem:[#allocation2 + $0x38] sm:$0xff]
      %v292 = vld [vmem:[#allocation2 + $0x48] sm:$0xff]
      %v293 = vld [vmem:[#allocation2 + $0x50] sm:$0xff]
      %v294 = vld [vmem:[#allocation2 + $0x60] sm:$0xff]
      %v295 = vld [vmem:[#allocation2 + $0x68] sm:$0xff]
      %v296 = vld [vmem:[#allocation2 + $0x78] sm:$0xff]
      %v297 = vld [vmem:[#allocation2 + $0x80] sm:$0xff]
      %v298 = vld [vmem:[#allocation2 + $0x90] sm:$0xff]
      %v299 = vld [vmem:[#allocation2 + $0x98] sm:$0xff]
      %v300 = vld [vmem:[#allocation2 + $0xa8] sm:$0xff]
      %v301 = vld [vmem:[#allocation2 + $0xb0] sm:$0xff]
      %v302 = vld [vmem:[#allocation2 + $0xc0] sm:$0xff]
      %v303 = vld [vmem:[#allocation2 + $0xc8] sm:$0xff]
      %v304 = vld [vmem:[#allocation2 + $0xd8] sm:$0xff]
      %v305 = vld [vmem:[#allocation2 + $0xe0] sm:$0xff]
      %v306 = vld [vmem:[#allocation2 + $0xf0] sm:$0xff]
      %v307 = vld [vmem:[#allocation2 + $0xf8] sm:$0xff]
      %v308 = vld [vmem:[#allocation2 + $0x108] sm:$0xff]
      %v309 = vld [vmem:[#allocation2 + $0x110] sm:$0xff]
      %v310 = vld [vmem:[#allocation2 + $0x120] sm:$0xff]
      %v311 = vld [vmem:[#allocation2 + $0x128] sm:$0xff]
      %v312 = vld [vmem:[#allocation2 + $0x138] sm:$0xff]
      %v313 = vld [vmem:[#allocation2 + $0x140] sm:$0xff]
      %v314 = vld [vmem:[#allocation2 + $0x150] sm:$0xff]
      %v315 = vld [vmem:[#allocation2 + $0x158] sm:$0xff]
      %v316 = vld [vmem:[#allocation2 + $0x168] sm:$0xff]
      %v317 = vld [vmem:[#allocation2 + $0x170] sm:$0xff]
      %v318 = vld [vmem:[#allocation2 + $0x180] sm:$0xff]
      %v319 = vld [vmem:[#allocation2 + $0x188] sm:$0xff]
      %v320 = vld [vmem:[#allocation2 + $0x198] sm:$0xff]
      %v321 = vld [vmem:[#allocation2 + $0x1a0] sm:$0xff]
      %v322 = vld [vmem:[#allocation2 + $0x1] sm:$0xff]
      %v323 = vld [vmem:[#allocation2 + $0x9] sm:$0xff]
      %v324 = vld [vmem:[#allocation2 + $0x19] sm:$0xff]
      %v325 = vld [vmem:[#allocation2 + $0x21] sm:$0xff]
      %v326 = vld [vmem:[#allocation2 + $0x31] sm:$0xff]
      %v327 = vld [vmem:[#allocation2 + $0x39] sm:$0xff]
      %v328 = vld [vmem:[#allocation2 + $0x49] sm:$0xff]
      %v329 = vld [vmem:[#allocation2 + $0x51] sm:$0xff]
      %v330 = vld [vmem:[#allocation2 + $0x61] sm:$0xff]
      %v331 = vld [vmem:[#allocation2 + $0x69] sm:$0xff]
      %v332 = vld [vmem:[#allocation2 + $0x79] sm:$0xff]
      %v333 = vld [vmem:[#allocation2 + $0x81] sm:$0xff]
      %v334 = vld [vmem:[#allocation2 + $0x91] sm:$0xff]
      %v335 = vld [vmem:[#allocation2 + $0x99] sm:$0xff]
      %v336 = vld [vmem:[#allocation2 + $0xa9] sm:$0xff]
      %v337 = vld [vmem:[#allocation2 + $0xb1] sm:$0xff]
      %v338 = vld [vmem:[#allocation2 + $0xc1] sm:$0xff]
      %v339 = vld [vmem:[#allocation2 + $0xc9] sm:$0xff]
      %v340 = vld [vmem:[#allocation2 + $0xd9] sm:$0xff]
      %v341 = vld [vmem:[#allocation2 + $0xe1] sm:$0xff]
      %v342 = vld [vmem:[#allocation2 + $0xf1] sm:$0xff]
      %v343 = vld [vmem:[#allocation2 + $0xf9] sm:$0xff]
      %v344 = vld [vmem:[#allocation2 + $0x109] sm:$0xff]
      %v345 = vld [vmem:[#allocation2 + $0x111] sm:$0xff]
      %v346 = vld [vmem:[#allocation2 + $0x121] sm:$0xff]
      %v347 = vld [vmem:[#allocation2 + $0x129] sm:$0xff]
      %v348 = vld [vmem:[#allocation2 + $0x139] sm:$0xff]
      %v349 = vld [vmem:[#allocation2 + $0x141] sm:$0xff]
      %v350 = vld [vmem:[#allocation2 + $0x151] sm:$0xff]
      %v351 = vld [vmem:[#allocation2 + $0x159] sm:$0xff]
      %v352 = vld [vmem:[#allocation2 + $0x169] sm:$0xff]
      %v353 = vld [vmem:[#allocation2 + $0x171] sm:$0xff]
      %v354 = vld [vmem:[#allocation2 + $0x181] sm:$0xff]
      %v355 = vld [vmem:[#allocation2 + $0x189] sm:$0xff]
      %v356 = vld [vmem:[#allocation2 + $0x199] sm:$0xff]
      %v357 = vld [vmem:[#allocation2 + $0x1a1] sm:$0xff]
      %v358 = vadd.f32 %v286, %v322
      %v359 = vadd.f32 %v287, %v323
      %v360 = vadd.f32 %v288, %v324
      %v361 = vadd.f32 %v289, %v325
      %v362 = vadd.f32 %v290, %v326
      %v363 = vadd.f32 %v291, %v327
      %v364 = vadd.f32 %v292, %v328
      %v365 = vadd.f32 %v293, %v329
      %v366 = vadd.f32 %v294, %v330
      %v367 = vadd.f32 %v295, %v331
      %v368 = vadd.f32 %v296, %v332
      %v369 = vadd.f32 %v297, %v333
      %v370 = vadd.f32 %v298, %v334
      %v371 = vadd.f32 %v299, %v335
      %v372 = vadd.f32 %v300, %v336
      %v373 = vadd.f32 %v301, %v337
      %v374 = vadd.f32 %v302, %v338
      %v375 = vadd.f32 %v303, %v339
      %v376 = vadd.f32 %v304, %v340
      %v377 = vadd.f32 %v305, %v341
      %v378 = vadd.f32 %v306, %v342
      %v379 = vadd.f32 %v307, %v343
      %v380 = vadd.f32 %v308, %v344
      %v381 = vadd.f32 %v309, %v345
      %v382 = vadd.f32 %v310, %v346
      %v383 = vadd.f32 %v311, %v347
      %v384 = vadd.f32 %v312, %v348
      %v385 = vadd.f32 %v313, %v349
      %v386 = vadd.f32 %v314, %v350
      %v387 = vadd.f32 %v315, %v351
      %v388 = vadd.f32 %v316, %v352
      %v389 = vadd.f32 %v317, %v353
      %v390 = vadd.f32 %v318, %v354
      %v391 = vadd.f32 %v319, %v355
      %v392 = vadd.f32 %v320, %v356
      %v393 = vadd.f32 %v321, %v357
      %v394 = vld [vmem:[#allocation2 + $0x2] sm:$0xff]
      %v395 = vld [vmem:[#allocation2 + $0xa] sm:$0xff]
      %v396 = vld [vmem:[#allocation2 + $0x1a] sm:$0xff]
      %v397 = vld [vmem:[#allocation2 + $0x22] sm:$0xff]
      %v398 = vld [vmem:[#allocation2 + $0x32] sm:$0xff]
      %v399 = vld [vmem:[#allocation2 + $0x3a] sm:$0xff]
      %v400 = vld [vmem:[#allocation2 + $0x4a] sm:$0xff]
      %v401 = vld [vmem:[#allocation2 + $0x52] sm:$0xff]
      %v402 = vld [vmem:[#allocation2 + $0x62] sm:$0xff]
      %v403 = vld [vmem:[#allocation2 + $0x6a] sm:$0xff]
      %v404 = vld [vmem:[#allocation2 + $0x7a] sm:$0xff]
      %v405 = vld [vmem:[#allocation2 + $0x82] sm:$0xff]
      %v406 = vld [vmem:[#allocation2 + $0x92] sm:$0xff]
      %v407 = vld [vmem:[#allocation2 + $0x9a] sm:$0xff]
      %v408 = vld [vmem:[#allocation2 + $0xaa] sm:$0xff]
      %v409 = vld [vmem:[#allocation2 + $0xb2] sm:$0xff]
      %v410 = vld [vmem:[#allocation2 + $0xc2] sm:$0xff]
      %v411 = vld [vmem:[#allocation2 + $0xca] sm:$0xff]
      %v412 = vld [vmem:[#allocation2 + $0xda] sm:$0xff]
      %v413 = vld [vmem:[#allocation2 + $0xe2] sm:$0xff]
      %v414 = vld [vmem:[#allocation2 + $0xf2] sm:$0xff]
      %v415 = vld [vmem:[#allocation2 + $0xfa] sm:$0xff]
      %v416 = vld [vmem:[#allocation2 + $0x10a] sm:$0xff]
      %v417 = vld [vmem:[#allocation2 + $0x112] sm:$0xff]
      %v418 = vld [vmem:[#allocation2 + $0x122] sm:$0xff]
      %v419 = vld [vmem:[#allocation2 + $0x12a] sm:$0xff]
      %v420 = vld [vmem:[#allocation2 + $0x13a] sm:$0xff]
      %v421 = vld [vmem:[#allocation2 + $0x142] sm:$0xff]
      %v422 = vld [vmem:[#allocation2 + $0x152] sm:$0xff]
      %v423 = vld [vmem:[#allocation2 + $0x15a] sm:$0xff]
      %v424 = vld [vmem:[#allocation2 + $0x16a] sm:$0xff]
      %v425 = vld [vmem:[#allocation2 + $0x172] sm:$0xff]
      %v426 = vld [vmem:[#allocation2 + $0x182] sm:$0xff]
      %v427 = vld [vmem:[#allocation2 + $0x18a] sm:$0xff]
      %v428 = vld [vmem:[#allocation2 + $0x19a] sm:$0xff]
      %v429 = vld [vmem:[#allocation2 + $0x1a2] sm:$0xff]
      %v430 = vadd.f32 %v358, %v394
      %v431 = vadd.f32 %v359, %v395
      %v432 = vadd.f32 %v360, %v396
      %v433 = vadd.f32 %v361, %v397
      %v434 = vadd.f32 %v362, %v398
      %v435 = vadd.f32 %v363, %v399
      %v436 = vadd.f32 %v364, %v400
      %v437 = vadd.f32 %v365, %v401
      %v438 = vadd.f32 %v366, %v402
      %v439 = vadd.f32 %v367, %v403
      %v440 = vadd.f32 %v368, %v404
      %v441 = vadd.f32 %v369, %v405
      %v442 = vadd.f32 %v370, %v406
      %v443 = vadd.f32 %v371, %v407
      %v444 = vadd.f32 %v372, %v408
      %v445 = vadd.f32 %v373, %v409
      %v446 = vadd.f32 %v374, %v410
      %v447 = vadd.f32 %v375, %v411
      %v448 = vadd.f32 %v376, %v412
      %v449 = vadd.f32 %v377, %v413
      %v450 = vadd.f32 %v378, %v414
      %v451 = vadd.f32 %v379, %v415
      %v452 = vadd.f32 %v380, %v416
      %v453 = vadd.f32 %v381, %v417
      %v454 = vadd.f32 %v382, %v418
      %v455 = vadd.f32 %v383, %v419
      %v456 = vadd.f32 %v384, %v420
      %v457 = vadd.f32 %v385, %v421
      %v458 = vadd.f32 %v386, %v422
      %v459 = vadd.f32 %v387, %v423
      %v460 = vadd.f32 %v388, %v424
      %v461 = vadd.f32 %v389, %v425
      %v462 = vadd.f32 %v390, %v426
      %v463 = vadd.f32 %v391, %v427
      %v464 = vadd.f32 %v392, %v428
      %v465 = vadd.f32 %v393, %v429
      %v466 = vadd.f32 %v430, %v432
      %v467 = vadd.f32 %v431, %v433
      %v468 = vadd.f32 %v432, %v434
      %v469 = vadd.f32 %v433, %v435
      %v470 = vadd.f32 %v434, %v436
      %v471 = vadd.f32 %v435, %v437
      %v472 = vadd.f32 %v436, %v438
      %v473 = vadd.f32 %v437, %v439
      %v474 = vadd.f32 %v438, %v440
      %v475 = vadd.f32 %v439, %v441
      %v476 = vadd.f32 %v440, %v442
      %v477 = vadd.f32 %v441, %v443
      %v478 = vadd.f32 %v442, %v444
      %v479 = vadd.f32 %v443, %v445
      %v480 = vadd.f32 %v444, %v446
      %v481 = vadd.f32 %v445, %v447
      %v482 = vadd.f32 %v446, %v448
      %v483 = vadd.f32 %v447, %v449
      %v484 = vadd.f32 %v448, %v450
      %v485 = vadd.f32 %v449, %v451
      %v486 = vadd.f32 %v450, %v452
      %v487 = vadd.f32 %v451, %v453
      %v488 = vadd.f32 %v452, %v454
      %v489 = vadd.f32 %v453, %v455
      %v490 = vadd.f32 %v454, %v456
      %v491 = vadd.f32 %v455, %v457
      %v492 = vadd.f32 %v456, %v458
      %v493 = vadd.f32 %v457, %v459
      %v494 = vadd.f32 %v458, %v460
      %v495 = vadd.f32 %v459, %v461
      %v496 = vadd.f32 %v460, %v462
      %v497 = vadd.f32 %v461, %v463
      %v498 = vadd.f32 %v466, %v434
      %v499 = vadd.f32 %v467, %v435
      %v500 = vadd.f32 %v468, %v436
      %v501 = vadd.f32 %v469, %v437
      %v502 = vadd.f32 %v470, %v438
      %v503 = vadd.f32 %v471, %v439
      %v504 = vadd.f32 %v472, %v440
      %v505 = vadd.f32 %v473, %v441
      %v506 = vadd.f32 %v474, %v442
      %v507 = vadd.f32 %v475, %v443
      %v508 = vadd.f32 %v476, %v444
      %v509 = vadd.f32 %v477, %v445
      %v510 = vadd.f32 %v478, %v446
      %v511 = vadd.f32 %v479, %v447
      %v512 = vadd.f32 %v480, %v448
      %v513 = vadd.f32 %v481, %v449
      %v514 = vadd.f32 %v482, %v450
      %v515 = vadd.f32 %v483, %v451
      %v516 = vadd.f32 %v484, %v452
      %v517 = vadd.f32 %v485, %v453
      %v518 = vadd.f32 %v486, %v454
      %v519 = vadd.f32 %v487, %v455
      %v520 = vadd.f32 %v488, %v456
      %v521 = vadd.f32 %v489, %v457
      %v522 = vadd.f32 %v490, %v458
      %v523 = vadd.f32 %v491, %v459
      %v524 = vadd.f32 %v492, %v460
      %v525 = vadd.f32 %v493, %v461
      %v526 = vadd.f32 %v494, %v462
      %v527 = vadd.f32 %v495, %v463
      %v528 = vadd.f32 %v496, %v464
      %v529 = vadd.f32 %v497, %v465
      %v530 = vld [vmem:[%s0] sm:$0xff]
      %v531 = vld [vmem:[%s0 + $0x8] sm:$0xff]
      %v532 = vld [vmem:[%s0 + $0x10] sm:$0xff]
      %v533 = vld [vmem:[%s0 + $0x18] sm:$0xff]
      %v534 = vld [vmem:[%s0 + $0x20] sm:$0xff]
      %v535 = vld [vmem:[%s0 + $0x28] sm:$0xff]
      %v536 = vld [vmem:[%s0 + $0x30] sm:$0xff]
      %v537 = vld [vmem:[%s0 + $0x38] sm:$0xff]
      %v538 = vld [vmem:[%s0 + $0x40] sm:$0xff]
      %v539 = vld [vmem:[%s0 + $0x48] sm:$0xff]
      %v540 = vld [vmem:[%s0 + $0x50] sm:$0xff]
      %v541 = vld [vmem:[%s0 + $0x58] sm:$0xff]
      %v542 = vld [vmem:[%s0 + $0x60] sm:$0xff]
      %v543 = vld [vmem:[%s0 + $0x68] sm:$0xff]
      %v544 = vld [vmem:[%s0 + $0x70] sm:$0xff]
      %v545 = vld [vmem:[%s0 + $0x78] sm:$0xff]
      %v546 = vld [vmem:[%s0 + $0x80] sm:$0xff]
      %v547 = vld [vmem:[%s0 + $0x88] sm:$0xff]
      %v548 = vld [vmem:[%s0 + $0x90] sm:$0xff]
      %v549 = vld [vmem:[%s0 + $0x98] sm:$0xff]
      %v550 = vld [vmem:[%s0 + $0xa0] sm:$0xff]
      %v551 = vld [vmem:[%s0 + $0xa8] sm:$0xff]
      %v552 = vld [vmem:[%s0 + $0xb0] sm:$0xff]
      %v553 = vld [vmem:[%s0 + $0xb8] sm:$0xff]
      %v554 = vld [vmem:[%s0 + $0xc0] sm:$0xff]
      %v555 = vld [vmem:[%s0 + $0xc8] sm:$0xff]
      %v556 = vld [vmem:[%s0 + $0xd0] sm:$0xff]
      %v557 = vld [vmem:[%s0 + $0xd8] sm:$0xff]
      %v558 = vld [vmem:[%s0 + $0xe0] sm:$0xff]
      %v559 = vld [vmem:[%s0 + $0xe8] sm:$0xff]
      %v560 = vld [vmem:[%s0 + $0xf0] sm:$0xff]
      %v561 = vld [vmem:[%s0 + $0xf8] sm:$0xff]
      %563 = vset.pattern.permute.xlu0 0
      %564 = vperm.xlu0 %563, %v530
      %v565 = vpop.permute.xlu0 %564
      %568 = vset.pattern.permute.xlu0 0
      %569 = vperm.xlu0 %568, %v531
      %v570 = vpop.permute.xlu0 %569
      %573 = vset.pattern.permute.xlu0 0
      %574 = vperm.xlu0 %573, %v532
      %v575 = vpop.permute.xlu0 %574
      %578 = vset.pattern.permute.xlu0 0
      %579 = vperm.xlu0 %578, %v533
      %v580 = vpop.permute.xlu0 %579
      %583 = vset.pattern.permute.xlu0 0
      %584 = vperm.xlu0 %583, %v534
      %v585 = vpop.permute.xlu0 %584
      %588 = vset.pattern.permute.xlu0 0
      %589 = vperm.xlu0 %588, %v535
      %v590 = vpop.permute.xlu0 %589
      %593 = vset.pattern.permute.xlu0 0
      %594 = vperm.xlu0 %593, %v536
      %v595 = vpop.permute.xlu0 %594
      %598 = vset.pattern.permute.xlu0 0
      %599 = vperm.xlu0 %598, %v537
      %v600 = vpop.permute.xlu0 %599
      %603 = vset.pattern.permute.xlu0 0
      %604 = vperm.xlu0 %603, %v538
      %v605 = vpop.permute.xlu0 %604
      %608 = vset.pattern.permute.xlu0 0
      %609 = vperm.xlu0 %608, %v539
      %v610 = vpop.permute.xlu0 %609
      %613 = vset.pattern.permute.xlu0 0
      %614 = vperm.xlu0 %613, %v540
      %v615 = vpop.permute.xlu0 %614
      %618 = vset.pattern.permute.xlu0 0
      %619 = vperm.xlu0 %618, %v541
      %v620 = vpop.permute.xlu0 %619
      %623 = vset.pattern.permute.xlu0 0
      %624 = vperm.xlu0 %623, %v542
      %v625 = vpop.permute.xlu0 %624
      %628 = vset.pattern.permute.xlu0 0
      %629 = vperm.xlu0 %628, %v543
      %v630 = vpop.permute.xlu0 %629
      %633 = vset.pattern.permute.xlu0 0
      %634 = vperm.xlu0 %633, %v544
      %v635 = vpop.permute.xlu0 %634
      %638 = vset.pattern.permute.xlu0 0
      %639 = vperm.xlu0 %638, %v545
      %v640 = vpop.permute.xlu0 %639
      %643 = vset.pattern.permute.xlu0 0
      %644 = vperm.xlu0 %643, %v546
      %v645 = vpop.permute.xlu0 %644
      %648 = vset.pattern.permute.xlu0 0
      %649 = vperm.xlu0 %648, %v547
      %v650 = vpop.permute.xlu0 %649
      %653 = vset.pattern.permute.xlu0 0
      %654 = vperm.xlu0 %653, %v548
      %v655 = vpop.permute.xlu0 %654
      %658 = vset.pattern.permute.xlu0 0
      %659 = vperm.xlu0 %658, %v549
      %v660 = vpop.permute.xlu0 %659
      %663 = vset.pattern.permute.xlu0 0
      %664 = vperm.xlu0 %663, %v550
      %v665 = vpop.permute.xlu0 %664
      %668 = vset.pattern.permute.xlu0 0
      %669 = vperm.xlu0 %668, %v551
      %v670 = vpop.permute.xlu0 %669
      %673 = vset.pattern.permute.xlu0 0
      %674 = vperm.xlu0 %673, %v552
      %v675 = vpop.permute.xlu0 %674
      %678 = vset.pattern.permute.xlu0 0
      %679 = vperm.xlu0 %678, %v553
      %v680 = vpop.permute.xlu0 %679
      %683 = vset.pattern.permute.xlu0 0
      %684 = vperm.xlu0 %683, %v554
      %v685 = vpop.permute.xlu0 %684
      %688 = vset.pattern.permute.xlu0 0
      %689 = vperm.xlu0 %688, %v555
      %v690 = vpop.permute.xlu0 %689
      %693 = vset.pattern.permute.xlu0 0
      %694 = vperm.xlu0 %693, %v556
      %v695 = vpop.permute.xlu0 %694
      %698 = vset.pattern.permute.xlu0 0
      %699 = vperm.xlu0 %698, %v557
      %v700 = vpop.permute.xlu0 %699
      %703 = vset.pattern.permute.xlu0 0
      %704 = vperm.xlu0 %703, %v558
      %v705 = vpop.permute.xlu0 %704
      %708 = vset.pattern.permute.xlu0 0
      %709 = vperm.xlu0 %708, %v559
      %v710 = vpop.permute.xlu0 %709
      %713 = vset.pattern.permute.xlu0 0
      %714 = vperm.xlu0 %713, %v560
      %v715 = vpop.permute.xlu0 %714
      %718 = vset.pattern.permute.xlu0 0
      %719 = vperm.xlu0 %718, %v561
      %v720 = vpop.permute.xlu0 %719
      %v722 = vmul.f32 %v498, %v565
      %v723 = vmul.f32 %v499, %v570
      %v724 = vmul.f32 %v500, %v575
      %v725 = vmul.f32 %v501, %v580
      %v726 = vmul.f32 %v502, %v585
      %v727 = vmul.f32 %v503, %v590
      %v728 = vmul.f32 %v504, %v595
      %v729 = vmul.f32 %v505, %v600
      %v730 = vmul.f32 %v506, %v605
      %v731 = vmul.f32 %v507, %v610
      %v732 = vmul.f32 %v508, %v615
      %v733 = vmul.f32 %v509, %v620
      %v734 = vmul.f32 %v510, %v625
      %v735 = vmul.f32 %v511, %v630
      %v736 = vmul.f32 %v512, %v635
      %v737 = vmul.f32 %v513, %v640
      %v738 = vmul.f32 %v514, %v645
      %v739 = vmul.f32 %v515, %v650
      %v740 = vmul.f32 %v516, %v655
      %v741 = vmul.f32 %v517, %v660
      %v742 = vmul.f32 %v518, %v665
      %v743 = vmul.f32 %v519, %v670
      %v744 = vmul.f32 %v520, %v675
      %v745 = vmul.f32 %v521, %v680
      %v746 = vmul.f32 %v522, %v685
      %v747 = vmul.f32 %v523, %v690
      %v748 = vmul.f32 %v524, %v695
      %v749 = vmul.f32 %v525, %v700
      %v750 = vmul.f32 %v526, %v705
      %v751 = vmul.f32 %v527, %v710
      %v752 = vmul.f32 %v528, %v715
      %v753 = vmul.f32 %v529, %v720
      %754 = vst.msk [vmem:[%s174] sm:$0xff] %vm175, %v722
      %755 = vst.msk [vmem:[%s174 + $0x8] sm:$0xff] %vm175, %v723
      %756 = vst.msk [vmem:[%s174 + $0x10] sm:$0xff] %vm175, %v724
      %757 = vst.msk [vmem:[%s174 + $0x18] sm:$0xff] %vm175, %v725
      %758 = vst.msk [vmem:[%s174 + $0x20] sm:$0xff] %vm175, %v726
      %759 = vst.msk [vmem:[%s174 + $0x28] sm:$0xff] %vm175, %v727
      %760 = vst.msk [vmem:[%s174 + $0x30] sm:$0xff] %vm175, %v728
      %761 = vst.msk [vmem:[%s174 + $0x38] sm:$0xff] %vm175, %v729
      %762 = vst.msk [vmem:[%s174 + $0x40] sm:$0xff] %vm175, %v730
      %763 = vst.msk [vmem:[%s174 + $0x48] sm:$0xff] %vm175, %v731
      %764 = vst.msk [vmem:[%s174 + $0x50] sm:$0xff] %vm175, %v732
      %765 = vst.msk [vmem:[%s174 + $0x58] sm:$0xff] %vm175, %v733
      %766 = vst.msk [vmem:[%s174 + $0x60] sm:$0xff] %vm175, %v734
      %767 = vst.msk [vmem:[%s174 + $0x68] sm:$0xff] %vm175, %v735
      %768 = vst.msk [vmem:[%s174 + $0x70] sm:$0xff] %vm175, %v736
      %769 = vst.msk [vmem:[%s174 + $0x78] sm:$0xff] %vm175, %v737
      %770 = vst.msk [vmem:[%s174 + $0x80] sm:$0xff] %vm175, %v738
      %771 = vst.msk [vmem:[%s174 + $0x88] sm:$0xff] %vm175, %v739
      %772 = vst.msk [vmem:[%s174 + $0x90] sm:$0xff] %vm175, %v740
      %773 = vst.msk [vmem:[%s174 + $0x98] sm:$0xff] %vm175, %v741
      %774 = vst.msk [vmem:[%s174 + $0xa0] sm:$0xff] %vm175, %v742
      %775 = vst.msk [vmem:[%s174 + $0xa8] sm:$0xff] %vm175, %v743
      %776 = vst.msk [vmem:[%s174 + $0xb0] sm:$0xff] %vm175, %v744
      %777 = vst.msk [vmem:[%s174 + $0xb8] sm:$0xff] %vm175, %v745
      %778 = vst.msk [vmem:[%s174 + $0xc0] sm:$0xff] %vm175, %v746
      %779 = vst.msk [vmem:[%s174 + $0xc8] sm:$0xff] %vm175, %v747
      %780 = vst.msk [vmem:[%s174 + $0xd0] sm:$0xff] %vm175, %v748
      %781 = vst.msk [vmem:[%s174 + $0xd8] sm:$0xff] %vm175, %v749
      %782 = vst.msk [vmem:[%s174 + $0xe0] sm:$0xff] %vm175, %v750
      %783 = vst.msk [vmem:[%s174 + $0xe8] sm:$0xff] %vm175, %v751
      %784 = vst.msk [vmem:[%s174 + $0xf0] sm:$0xff] %vm175, %v752
      %785 = vst.msk [vmem:[%s174 + $0xf8] sm:$0xff] %vm175, %v753
      %p786 = scmp.lt.s32.totalorder %s17, 1
      %s787 = scalar_select %p786, %s17, 1
      %p788 = scmp.lt.s32.totalorder %s18, 0
      %s789 = scalar_select %p788, %s18, 0
      %s790 = smul.addr %s787, 32
      %s791 = sadd.s32 %s789, %s790
      %s792 = smul.addr %s791, 8
      %s793 = scalar_lea.vmem %s2, %s792
      // Predicated region
      $region29: #{tpu_custom_call.1} parent=27 // pred_check
        %p794 = pneg %p94
      $region30: #{tpu_custom_call.1} parent=27 // pred_check_branch
        %796 = sbr.rel (%p794) target = $region32
      $region31: #{tpu_custom_call.1} parent=27 // pred_region
        _
      $region32: #{tpu_custom_call.1} parent=27 // pred_fallthru
        _
    $region28: #{tpu_custom_call.1} parent=5 // pred_fallthru
      _
    %p797 = scmp.le.s32.totalorder 2, %s8
    // Predicated region
    $region33: #{tpu_custom_call.1} parent=5 // pred_check
      %p798 = pneg %p797
    $region34: #{tpu_custom_call.1} parent=5 // pred_check_branch
      %800 = sbr.rel (%p798) target = $region36
    $region35: #{tpu_custom_call.1} parent=5 // pred_region
      %s801 = ssub.s32 %s8, 2
      // Predicated region
      $region37: #{tpu_custom_call.1} parent=35 // pred_check
        %p802 = pneg %p100
      $region38: #{tpu_custom_call.1} parent=35 // pred_check_branch
        %804 = sbr.rel (%p802) target = $region40
      $region39: #{tpu_custom_call.1} parent=35 // pred_region
        %p805 = scmp.lt.s32.totalorder %s19, 1
        %s806 = scalar_select %p805, %s19, 1
        %p807 = scmp.lt.s32.totalorder %s20, 0
        %s808 = scalar_select %p807, %s20, 0
        %s809 = smul.addr %s806, 32
        %s810 = sadd.s32 %s808, %s809
        %s811 = smul.addr %s810, 8
        %s812 = scalar_lea.vmem %s2, %s811
      $region40: #{tpu_custom_call.1} parent=35 // pred_fallthru
        _
    $region36: #{tpu_custom_call.1} parent=5 // pred_fallthru
      _
  $region6: #{tpu_custom_call.1} parent=0 // loop_footer
    %s12 = sadd.s32 1, %s8
  $region7: #{tpu_custom_call.1} parent=0 // loop_footer_branch
    %7 = sbr.rel target = $region3
  $region8: #{tpu_custom_call.1} parent=0 // loop_exit
    _

</llo_original>
